<compile_context>
chip_gen: v5e
topology: v5e:2x2
jax: 0.10.0
libtpu: 0.0.40
codegen_flags: <defaults>
</compile_context>

<pallas_src>
import functools
import math

import jax
import jax.numpy as jnp
from jax.experimental import pallas as pl
from jax.experimental.pallas import tpu as pltpu


def _silog_kernel(pred_ref, tgt_ref, out_ref, s1_ref, s2_ref, *,
                  neg_log_eps, inv_cnt):
    # pred_ref: (1, C, T)   logits tile for image n, HW-slice k
    # tgt_ref : (1, 1, T)   int32 class indices for the same slice
    # out_ref : (1, 8, 128) per-image loss, broadcast over the block ([n,0,0] read back)
    # s1_ref  : (1, T)      per-lane partial sum of diff        (accumulated over k)
    # s2_ref  : (1, T)      per-lane partial sum of diff*diff   (accumulated over k)
    k = pl.program_id(1)
    nk = pl.num_programs(1)

    @pl.when(k == 0)
    def _():
        s1_ref[...] = jnp.zeros_like(s1_ref)
        s2_ref[...] = jnp.zeros_like(s2_ref)

    x = pred_ref[0].astype(jnp.float32)          # (C, T)
    t = tgt_ref[0]                               # (1, T) int32
    C, T = x.shape

    # log-softmax of the target class via log-sum-exp (no full softmax / per-elem log)
    m = jnp.max(x, axis=0, keepdims=True)                              # (1, T)
    lse = jnp.log(jnp.sum(jnp.exp(x - m), axis=0, keepdims=True))      # (1, T)
    cls = jax.lax.broadcasted_iota(jnp.int32, (C, T), 0)
    x_t = jnp.sum(jnp.where(cls == t, x, 0.0), axis=0, keepdims=True)  # (1, T)

    # diff_log = log(max(onehot,eps)) - log(max(p_t,eps))
    #          = 0 - max(log p_t, log eps) = min((m + lse) - x_t, -log eps)
    diff = jnp.minimum((m - x_t) + lse, neg_log_eps)                   # (1, T)

    s1_ref[...] += diff
    s2_ref[...] += diff * diff

    @pl.when(k == nk - 1)
    def _():
        # One cross-lane (XLU) reduction per image instead of per tile.
        s1 = jnp.sum(s1_ref[...])
        s2 = jnp.sum(s2_ref[...])
        mean = s1 * inv_cnt
        sq_mean = s2 * inv_cnt
        # clamp: argument can round slightly negative when diff is nearly constant
        loss_n = jnp.sqrt(jnp.maximum(sq_mean - 0.5 * mean * mean, 0.0))
        out_ref[...] = jnp.full(out_ref.shape, loss_n, dtype=out_ref.dtype)


def _pick_hw_tile(hw, c, max_block_bytes=4 * 1024 * 1024):
    """Largest T that is a multiple of 128, divides hw, and keeps one (C, T) f32
    pred block under max_block_bytes (double-buffered by the pipeline -> fits v7x)."""
    best = 128
    t = 128
    while t <= hw:
        if hw % t == 0 and c * t * 4 <= max_block_bytes:
            best = t
        t += 128
    return best


def silog_loss_pallas(pred, target, weight=None, *, eps=1e-6,
                      reduction="mean", loss_weight=1.0):
    """SiLogLoss.forward equivalent. pred: (N,C,H,W) logits, target: (N,H,W) int."""
    N, C, H, W = pred.shape
    HW = H * W
    assert HW % 128 == 0, "H*W must be a multiple of 128 (lane width)"
    # TODO(synk): ragged HW (not a multiple of 128) would need a masked tail tile.

    T = _pick_hw_tile(HW, C)
    K = HW // T

    pred_r = pred.reshape(N, C, HW)                  # keep input dtype (bf16 stays bf16)
    tgt_r = target.reshape(N, 1, HW).astype(jnp.int32)

    kernel = functools.partial(
        _silog_kernel,
        neg_log_eps=float(-math.log(eps)),
        inv_cnt=float(1.0 / max(float(HW), eps)),    # cnt == HW exactly (one valid/pos)
    )

    out = pl.pallas_call(
        kernel,
        out_shape=jax.ShapeDtypeStruct((N, 8, 128), jnp.float32),
        grid_spec=pltpu.PrefetchScalarGridSpec(
            num_scalar_prefetch=0,
            grid=(N, K),                             # HW-reduction axis last
            in_specs=[
                pl.BlockSpec((1, C, T), lambda n, k: (n, 0, k)),
                pl.BlockSpec((1, 1, T), lambda n, k: (n, 0, k)),
            ],
            out_specs=pl.BlockSpec((1, 8, 128), lambda n, k: (n, 0, 0)),
            scratch_shapes=[
                pltpu.VMEM((1, T), jnp.float32),
                pltpu.VMEM((1, T), jnp.float32),
            ],
        ),
        compiler_params=pltpu.CompilerParams(
            dimension_semantics=("parallel", "arbitrary"),
            vmem_limit_bytes=32 * 1024 * 1024,
        ),
    )(pred_r, tgt_r)

    loss = out[:, 0, 0]                              # (N,) per-image SiLog loss
    if weight is not None:
        loss = loss * weight.astype(jnp.float32)
    if reduction == "mean":
        loss = jnp.mean(loss)
    elif reduction == "sum":
        loss = jnp.sum(loss)
    # reduction == 'none' leaves the (N,) vector
    return loss_weight * loss


def _silog_loss_reference(pred, target, eps=1e-6):
    """Pure-JAX port of the PyTorch silog_loss (reduction='mean', weight=None)."""
    N, C, H, W = pred.shape
    p = jax.nn.softmax(pred.astype(jnp.float32), axis=1).reshape(N, -1)
    oh = jax.nn.one_hot(target, C, dtype=jnp.float32)
    oh = jnp.transpose(oh, (0, 3, 1, 2)).reshape(N, -1)
    diff = jnp.log(jnp.maximum(oh, eps)) - jnp.log(jnp.maximum(p, eps))
    valid = (oh > eps) & ~jnp.isnan(diff)
    vm = valid.astype(jnp.float32)
    d = jnp.where(valid, diff, 0.0)
    cnt = jnp.maximum(vm.sum(axis=1), eps)
    sq_mean = (d * d * vm).sum(axis=1) / cnt
    mean = (d * vm).sum(axis=1) / cnt
    loss = jnp.sqrt(sq_mean - 0.5 * mean * mean)
    return jnp.mean(loss)


if __name__ == "__main__":
    key = jax.random.PRNGKey(0)
    k1, k2 = jax.random.split(key)

    N, C, H, W = 2, 4, 16, 16
    pred = jax.random.normal(k1, (N, C, H, W), dtype=jnp.float32)
    target = jax.random.randint(k2, (N, H, W), 0, C, dtype=jnp.int32)

    out = silog_loss_pallas(pred, target, eps=1e-6, reduction="mean", loss_weight=1.0)
    out = jax.block_until_ready(out)

    ref = _silog_loss_reference(pred, target, eps=1e-6)
    assert out.shape == ref.shape == ()
    assert jnp.allclose(out, ref, rtol=1e-4, atol=1e-5), (out, ref)

    print("KERNEL_OK")
</pallas_src>

<mosaic_0001>
module attributes {stable_mosaic.version = 11 : i64} {
  func.func @_silog_kernel(%arg0: i32, %arg1: i32, %arg2: memref<1x4x256xf32, #tpu.memory_space<vmem>>, %arg3: memref<1x1x256xi32, #tpu.memory_space<vmem>>, %arg4: memref<1x8x128xf32, #tpu.memory_space<vmem>>, %arg5: memref<1x256xf32, #tpu.memory_space<vmem>>, %arg6: memref<1x256xf32, #tpu.memory_space<vmem>>) attributes {dimension_semantics = [#tpu.dimension_semantics<parallel>, #tpu.dimension_semantics<arbitrary>], iteration_bounds = array<i64: 2, 1>, scalar_prefetch = 0 : i64, scratch_operands = 2 : i64, tpu.core_type = #tpu.core_type<tc>, window_params = [{transform_indices = @transform_0, window_bounds = array<i64: 1, 4, 256>}, {transform_indices = @transform_1, window_bounds = array<i64: 1, 1, 256>}, {transform_indices = @transform_2, window_bounds = array<i64: 1, 8, 128>}]} {
    %c0_i32 = arith.constant 0 : i32
    %0 = arith.cmpi eq, %arg1, %c0_i32 : i32
    %1 = arith.extui %0 : i1 to i32
    %c0_i32_0 = arith.constant 0 : i32
    %2 = arith.cmpi ne, %1, %c0_i32_0 : i32
    scf.if %2 {
      %cst_20 = arith.constant 0.000000e+00 : f32
      %36 = vector.broadcast %cst_20 : f32 to vector<1x256xf32>
      %c0_21 = arith.constant 0 : index
      %c0_22 = arith.constant 0 : index
      %37 = vector.load %arg5[%c0_21, %c0_22] : memref<1x256xf32, #tpu.memory_space<vmem>>, vector<1x256xf32>
      tpu.vector_store %arg5[%c0_21, %c0_22], %36 {strides = array<i32>} : memref<1x256xf32, #tpu.memory_space<vmem>>, vector<1x256xf32>,
      %cst_23 = arith.constant 0.000000e+00 : f32
      %38 = vector.broadcast %cst_23 : f32 to vector<1x256xf32>
      %c0_24 = arith.constant 0 : index
      %c0_25 = arith.constant 0 : index
      %39 = vector.load %arg6[%c0_24, %c0_25] : memref<1x256xf32, #tpu.memory_space<vmem>>, vector<1x256xf32>
      tpu.vector_store %arg6[%c0_24, %c0_25], %38 {strides = array<i32>} : memref<1x256xf32, #tpu.memory_space<vmem>>, vector<1x256xf32>,
    } else {
    }
    %c0 = arith.constant 0 : index
    %c0_1 = arith.constant 0 : index
    %c0_2 = arith.constant 0 : index
    %3 = vector.load %arg2[%c0, %c0_1, %c0_2] : memref<1x4x256xf32, #tpu.memory_space<vmem>>, vector<1x4x256xf32>
    %4 = vector.shape_cast %3 : vector<1x4x256xf32> to vector<4x256xf32>
    %c0_3 = arith.constant 0 : index
    %c0_4 = arith.constant 0 : index
    %c0_5 = arith.constant 0 : index
    %5 = vector.load %arg3[%c0_3, %c0_4, %c0_5] : memref<1x1x256xi32, #tpu.memory_space<vmem>>, vector<1x1x256xi32>
    %6 = vector.shape_cast %5 : vector<1x1x256xi32> to vector<1x256xi32>
    %cst = arith.constant dense<0xFF800000> : vector<256xf32>
    %7 = vector.multi_reduction <maximumf>, %4, %cst [0] : vector<4x256xf32> to vector<256xf32>
    %8 = vector.shape_cast %7 : vector<256xf32> to vector<1x256xf32>
    %9 = vector.broadcast %8 : vector<1x256xf32> to vector<4x256xf32>
    %10 = arith.subf %4, %9 : vector<4x256xf32>
    %11 = math.exp %10 : vector<4x256xf32>
    %cst_6 = arith.constant dense<0.000000e+00> : vector<256xf32>
    %12 = vector.multi_reduction <add>, %11, %cst_6 [0] : vector<4x256xf32> to vector<256xf32>
    %13 = vector.shape_cast %12 : vector<256xf32> to vector<1x256xf32>
    %14 = math.log %13 : vector<1x256xf32>
    %15 = tpu.iota {dimensions = array<i32: 0>} : vector<4x256xi32>
    %16 = vector.broadcast %6 : vector<1x256xi32> to vector<4x256xi32>
    %17 = arith.cmpi eq, %15, %16 : vector<4x256xi32>
    %cst_7 = arith.constant 0.000000e+00 : f32
    %18 = vector.broadcast %cst_7 : f32 to vector<4x256xf32>
    %19 = arith.select %17, %4, %18 : vector<4x256xi1>, vector<4x256xf32>
    %cst_8 = arith.constant dense<0.000000e+00> : vector<256xf32>
    %20 = vector.multi_reduction <add>, %19, %cst_8 [0] : vector<4x256xf32> to vector<256xf32>
    %21 = vector.shape_cast %20 : vector<256xf32> to vector<1x256xf32>
    %22 = arith.subf %8, %21 : vector<1x256xf32>
    %23 = arith.addf %22, %14 : vector<1x256xf32>
    %cst_9 = arith.constant 13.8155107 : f32
    %24 = vector.broadcast %cst_9 : f32 to vector<1x256xf32>
    %25 = arith.minimumf %23, %24 : vector<1x256xf32>
    %c0_10 = arith.constant 0 : index
    %c0_11 = arith.constant 0 : index
    %26 = vector.load %arg5[%c0_10, %c0_11] : memref<1x256xf32, #tpu.memory_space<vmem>>, vector<1x256xf32>
    %27 = arith.addf %26, %25 : vector<1x256xf32>
    %c0_12 = arith.constant 0 : index
    %c0_13 = arith.constant 0 : index
    %28 = vector.load %arg5[%c0_12, %c0_13] : memref<1x256xf32, #tpu.memory_space<vmem>>, vector<1x256xf32>
    tpu.vector_store %arg5[%c0_12, %c0_13], %27 {strides = array<i32>} : memref<1x256xf32, #tpu.memory_space<vmem>>, vector<1x256xf32>,
    %c0_14 = arith.constant 0 : index
    %c0_15 = arith.constant 0 : index
    %29 = vector.load %arg6[%c0_14, %c0_15] : memref<1x256xf32, #tpu.memory_space<vmem>>, vector<1x256xf32>
    %30 = arith.mulf %25, %25 : vector<1x256xf32>
    %31 = arith.addf %29, %30 : vector<1x256xf32>
    %c0_16 = arith.constant 0 : index
    %c0_17 = arith.constant 0 : index
    %32 = vector.load %arg6[%c0_16, %c0_17] : memref<1x256xf32, #tpu.memory_space<vmem>>, vector<1x256xf32>
    tpu.vector_store %arg6[%c0_16, %c0_17], %31 {strides = array<i32>} : memref<1x256xf32, #tpu.memory_space<vmem>>, vector<1x256xf32>,
    %c0_i32_18 = arith.constant 0 : i32
    %33 = arith.cmpi eq, %arg1, %c0_i32_18 : i32
    %34 = arith.extui %33 : i1 to i32
    %c0_i32_19 = arith.constant 0 : i32
    %35 = arith.cmpi ne, %34, %c0_i32_19 : i32
    scf.if %35 {
      %c0_20 = arith.constant 0 : index
      %c0_21 = arith.constant 0 : index
      %36 = vector.load %arg5[%c0_20, %c0_21] : memref<1x256xf32, #tpu.memory_space<vmem>>, vector<1x256xf32>
      %37 = vector.shape_cast %36 : vector<1x256xf32> to vector<1x1x256xf32>
      %cst_22 = arith.constant dense<0.000000e+00> : vector<1xf32>
      %38 = vector.multi_reduction <add>, %37, %cst_22 [1, 2] : vector<1x1x256xf32> to vector<1xf32>
      %39 = vector.shape_cast %38 : vector<1xf32> to vector<1x1x1xf32>
      %40 = vector.extract %39[0, 0, 0] : f32 from vector<1x1x1xf32>
      %c0_23 = arith.constant 0 : index
      %c0_24 = arith.constant 0 : index
      %41 = vector.load %arg6[%c0_23, %c0_24] : memref<1x256xf32, #tpu.memory_space<vmem>>, vector<1x256xf32>
      %42 = vector.shape_cast %41 : vector<1x256xf32> to vector<1x1x256xf32>
      %cst_25 = arith.constant dense<0.000000e+00> : vector<1xf32>
      %43 = vector.multi_reduction <add>, %42, %cst_25 [1, 2] : vector<1x1x256xf32> to vector<1xf32>
      %44 = vector.shape_cast %43 : vector<1xf32> to vector<1x1x1xf32>
      %45 = vector.extract %44[0, 0, 0] : f32 from vector<1x1x1xf32>
      %cst_26 = arith.constant 3.906250e-03 : f32
      %46 = arith.mulf %40, %cst_26 : f32
      %cst_27 = arith.constant 3.906250e-03 : f32
      %47 = arith.mulf %45, %cst_27 : f32
      %cst_28 = arith.constant 5.000000e-01 : f32
      %48 = arith.mulf %cst_28, %46 : f32
      %49 = arith.mulf %48, %46 : f32
      %50 = arith.subf %47, %49 : f32
      %cst_29 = arith.constant 0.000000e+00 : f32
      %51 = arith.maximumf %50, %cst_29 : f32
      %52 = math.sqrt %51 : f32
      %53 = vector.broadcast %52 : f32 to vector<1x8x128xf32>
      %c0_30 = arith.constant 0 : index
      %c0_31 = arith.constant 0 : index
      %c0_32 = arith.constant 0 : index
      %54 = vector.load %arg4[%c0_30, %c0_31, %c0_32] : memref<1x8x128xf32, #tpu.memory_space<vmem>>, vector<1x8x128xf32>
      tpu.vector_store %arg4[%c0_30, %c0_31, %c0_32], %53 {strides = array<i32>} : memref<1x8x128xf32, #tpu.memory_space<vmem>>, vector<1x8x128xf32>,
    } else {
    }
    return
  }
  func.func @transform_0(%arg0: i32, %arg1: i32) -> (i32, i32, i32) {
    %c0_i32 = arith.constant 0 : i32
    %c0_i32_0 = arith.constant 0 : i32
    return %arg0, %c0_i32, %arg1 : i32, i32, i32
  }
  func.func @transform_1(%arg0: i32, %arg1: i32) -> (i32, i32, i32) {
    %c0_i32 = arith.constant 0 : i32
    %c0_i32_0 = arith.constant 0 : i32
    return %arg0, %c0_i32, %arg1 : i32, i32, i32
  }
  func.func @transform_2(%arg0: i32, %arg1: i32) -> (i32, i32, i32) {
    %c0_i32 = arith.constant 0 : i32
    %c0_i32_0 = arith.constant 0 : i32
    %c0_i32_1 = arith.constant 0 : i32
    return %arg0, %c0_i32, %c0_i32_0 : i32, i32, i32
  }
}

</mosaic_0001>

<llo_original>
// kernel: tpu_custom_call.1
$region0: #{tpu_custom_call.1}
  #allocation0 [shape = 'u32[]', space=smem, size = 0x4, offset = 0x4, fixed_abs, tag = 'smem constant byte address 0x4 - core index']
  #allocation1 [shape = 'u32[72,128]{1,0:T(1,128)}', space=vmem, size = 0x9000, scoped, tag = 'internal scratch']
  #allocation2 [shape = 'f32[1,256]{1,0:T(1,128)}', space=vmem, size = 0x400, scoped, tag = 'scratch operand']
  #allocation3 [shape = 'f32[1,256]{1,0:T(1,128)}', space=vmem, size = 0x400, scoped, tag = 'scratch operand']
  %s0 = inlined_call_operand.hbm [shape: f32[2,4,256], index: 0, kind: input, shape index: {}]
  %s1 = inlined_call_operand.hbm [shape: s32[2,1,256], index: 1, kind: input, shape index: {}]
  %s2 = inlined_call_operand.hbm [shape: f32[2,8,128], index: 2, kind: output, shape index: {}]
  %s3 = sld [smem:[#allocation0]]
  $region57: #{tpu_custom_call.1} parent=0
    _
  %s5 = ssub.s32 1, %s3
  %s6 = scalar_select 0, %s5, %s3
  $region1: #{tpu_custom_call.1} parent=0
    #allocation4 [shape = 'u8[8192]{0}', space=vmem, size = 0x2000, scoped, tag = 'input window, operand 0']
    #allocation5 [shape = 's32[2]{0}', space=sflag, size = 0x8, scoped, tag = 'scoped memory for tpu_custom_call.1']
    #allocation6 [shape = 's32[2]{0}', space=sflag, size = 0x8, scoped, tag = 'scoped memory for tpu_custom_call.1']
    #allocation7 [shape = 'u8[2048]{0}', space=vmem, size = 0x800, scoped, tag = 'input window, operand 1']
    #allocation8 [shape = 's32[2]{0}', space=sflag, size = 0x8, scoped, tag = 'scoped memory for tpu_custom_call.1']
    #allocation9 [shape = 'u8[8192]{0}', space=vmem, size = 0x2000, scoped, tag = 'output window, operand 0']
    %7 = vsyncpa [#allocation5], 0
    %s8 = scalar_lea.sflag [#allocation5], 1
    %9 = vsyncpa %s8, 0
    %10 = vsyncpa [#allocation8], 0
    %s11 = scalar_lea.sflag [#allocation8], 1
    %12 = vsyncpa %s11, 0
    %13 = vsyncpa [#allocation6], 0
    %s14 = scalar_lea.sflag [#allocation6], 1
    %15 = vsyncpa %s14, 0
    loop: start=0, step=1, limit=4
    $region2: #{tpu_custom_call.1} parent=1 // loop_pre_header
      _
    $region3: #{tpu_custom_call.1} parent=1 // loop_header
      %s17 = sphi 0, %s21
      %p18 = scmp.ge.s32.totalorder %s17, 4
      %s24 = sphi 0, %s36
      %s25 = sphi 0, %s32
      %s26 = sphi 0, %s24
      %s27 = sphi 0, %s25
      %s28 = sphi 0, %s26
      %s29 = sphi 0, %s27
      %s41 = sphi 0, %s43
      %s44 = sphi 0, %s41
      %s45 = sphi 0, %s44
      %s61 = sphi 0, %s45
      %s69 = sphi 0, %s71
      %s72 = sphi 0, %s69
      %s73 = sphi 0, %s72
      %s89 = sphi 0, %s73
      %s95 = sphi 0, %s97
      %s98 = sphi 0, %s95
      %s99 = sphi 0, %s98
      %s115 = sphi 0, %s99
    $region4: #{tpu_custom_call.1} parent=1 // loop_header_branch
      %20 = sbr.rel (%p18) target = $region8
    $region5: #{tpu_custom_call.1} parent=1 // loop_body
      %s22 = ssub.s32 %s17, 1
      %s23 = ssub.s32 %s17, 2
      %s30 = sadd.s32 1, %s25
      %p31 = scmp.ge.s32.totalorder %s30, 1
      %s32 = scalar_select %p31, 0, %s30
      %s33 = sadd.s32 1, %s24
      %s34 = scalar_select %p31, %s33, %s24
      %p35 = scmp.ge.s32.totalorder %s34, 2
      %s36 = scalar_select %p35, 0, %s34
      %s37 = ssub.s32 %s24, %s36
      %s38 = ssub.s32 %s25, %s32
      %s39 = sor.u32 %s37, %s38
      %p40 = scmp.eq.s32.totalorder %s39, 0
      %s42 = sadd.s32 %s41, 1
      %s43 = scalar_select %p40, %s41, %s42
      %p46 = pneg %p40
      %p47 = scmp.eq.s32.totalorder %s17, 1
      %p48 = por %p46, %p47
      %p49 = scmp.ne.s32.totalorder %s41, %s44
      %p50 = scmp.eq.s32.totalorder %s17, 0
      %p51 = por %p49, %p50
      %p52 = scmp.ne.s32.totalorder %s41, %s44
      %p53 = scmp.eq.s32.totalorder %s22, 1
      %p54 = por %p52, %p53
      %p55 = scmp.ne.s32.totalorder %s44, %s45
      %p56 = scmp.eq.s32.totalorder %s22, 0
      %p57 = por %p55, %p56
      %p58 = scmp.ne.s32.totalorder %s44, %s45
      %p59 = scmp.eq.s32.totalorder %s23, 1
      %p60 = por %p58, %p59
      %p62 = scmp.ne.s32.totalorder %s45, %s61
      %p63 = scmp.eq.s32.totalorder %s23, 0
      %p64 = por %p62, %p63
      %s65 = ssub.s32 %s24, %s36
      %s66 = ssub.s32 %s25, %s32
      %s67 = sor.u32 %s65, %s66
      %p68 = scmp.eq.s32.totalorder %s67, 0
      %s70 = sadd.s32 %s69, 1
      %s71 = scalar_select %p68, %s69, %s70
      %p74 = pneg %p68
      %p75 = scmp.eq.s32.totalorder %s17, 1
      %p76 = por %p74, %p75
      %p77 = scmp.ne.s32.totalorder %s69, %s72
      %p78 = scmp.eq.s32.totalorder %s17, 0
      %p79 = por %p77, %p78
      %p80 = scmp.ne.s32.totalorder %s69, %s72
      %p81 = scmp.eq.s32.totalorder %s22, 1
      %p82 = por %p80, %p81
      %p83 = scmp.ne.s32.totalorder %s72, %s73
      %p84 = scmp.eq.s32.totalorder %s22, 0
      %p85 = por %p83, %p84
      %p86 = scmp.ne.s32.totalorder %s72, %s73
      %p87 = scmp.eq.s32.totalorder %s23, 1
      %p88 = por %p86, %p87
      %p90 = scmp.ne.s32.totalorder %s73, %s89
      %p91 = scmp.eq.s32.totalorder %s23, 0
      %p92 = por %p90, %p91
      %s93 = ssub.s32 %s24, %s36
      %p94 = scmp.eq.s32.totalorder %s93, 0
      %s96 = sadd.s32 %s95, 1
      %s97 = scalar_select %p94, %s95, %s96
      %p100 = pneg %p94
      %p101 = scmp.eq.s32.totalorder %s17, 1
      %p102 = por %p100, %p101
      %p103 = scmp.ne.s32.totalorder %s95, %s98
      %p104 = scmp.eq.s32.totalorder %s17, 0
      %p105 = por %p103, %p104
      %p106 = scmp.ne.s32.totalorder %s95, %s98
      %p107 = scmp.eq.s32.totalorder %s22, 1
      %p108 = por %p106, %p107
      %p109 = scmp.ne.s32.totalorder %s98, %s99
      %p110 = scmp.eq.s32.totalorder %s22, 0
      %p111 = por %p109, %p110
      %p112 = scmp.ne.s32.totalorder %s98, %s99
      %p113 = scmp.eq.s32.totalorder %s23, 1
      %p114 = por %p112, %p113
      %p116 = scmp.ne.s32.totalorder %s99, %s115
      %p117 = scmp.eq.s32.totalorder %s23, 0
      %p118 = por %p116, %p117
      %p119 = scmp.le.s32.totalorder 1, %s17
      %p120 = scmp.lt.s32.totalorder %s17, 3
      %p121 = pnand %p119, %p120
      %p122 = pneg %p121
      // Predicated region
      $region9: #{tpu_custom_call.1} parent=5 // pred_check
        _
      $region10: #{tpu_custom_call.1} parent=5 // pred_check_branch
        %124 = sbr.rel (%p121) target = $region12
      $region11: #{tpu_custom_call.1} parent=5 // pred_region
        %s125 = ssub.s32 %s17, 1
      $region12: #{tpu_custom_call.1} parent=5 // pred_fallthru
        _
      %p126 = scmp.lt.s32.totalorder %s17, 2
      // Predicated region
      $region13: #{tpu_custom_call.1} parent=5 // pred_check
        %p127 = pneg %p126
      $region14: #{tpu_custom_call.1} parent=5 // pred_check_branch
        %129 = sbr.rel (%p127) target = $region16
      $region15: #{tpu_custom_call.1} parent=5 // pred_region
        // Predicated region
        $region17: #{tpu_custom_call.1} parent=15 // pred_check
          %p130 = pneg %p51
        $region18: #{tpu_custom_call.1} parent=15 // pred_check_branch
          %132 = sbr.rel (%p130) target = $region20
        $region19: #{tpu_custom_call.1} parent=15 // pred_region
          %s133 = sand.u32 %s41, 1
          %s134 = scalar_lea.sflag [#allocation5], %s133
          %s135 = sand.u32 %s41, 1
          %s136 = smul.addr %s135, 8
          %s137 = scalar_lea.vmem [#allocation4], %s136
          %s138 = smul.u32 2, %s25
          %140 = vsyncadd %s134, 0
          %s141 = smul.addr %s24, 2
          %s142 = sadd.s32 %s138, %s141
          %s143 = smul.addr %s142, 4
          %s144 = scalar_lea.hbm %s0, %s143
          %s146 = sshll.u32 %s144, 4
          %s147 = int_to_ptr.hbm [resolvable:$true] %s146
          %s148 = sshll.u32 %s137, 4
          %s149 = int_to_ptr.vmem [resolvable:$true] %s148
          %151 = dma.hbm_to_vmem [thread:$0]  %s147, 128, %s149, %s134
        $region20: #{tpu_custom_call.1} parent=15 // pred_fallthru
          _
        // Predicated region
        $region21: #{tpu_custom_call.1} parent=15 // pred_check
          %p152 = pneg %p79
        $region22: #{tpu_custom_call.1} parent=15 // pred_check_branch
          %154 = sbr.rel (%p152) target = $region24
        $region23: #{tpu_custom_call.1} parent=15 // pred_region
          %s155 = sand.u32 %s69, 1
          %s156 = scalar_lea.sflag [#allocation8], %s155
          %s157 = sand.u32 %s69, 1
          %s158 = smul.addr %s157, 2
          %s159 = scalar_lea.vmem [#allocation7], %s158
          %s160 = smul.u32 2, %s25
          %162 = vsyncadd %s156, 0
          %s163 = smul.addr %s24, 2
          %s164 = sadd.s32 %s160, %s163
          %s165 = scalar_lea.hbm %s1, %s164
          %s167 = sshll.u32 %s165, 4
          %s168 = int_to_ptr.hbm [resolvable:$true] %s167
          %s169 = sshll.u32 %s159, 4
          %s170 = int_to_ptr.vmem [resolvable:$true] %s169
          %172 = dma.hbm_to_vmem [thread:$0]  %s168, 32, %s170, %s156
        $region24: #{tpu_custom_call.1} parent=15 // pred_fallthru
          _
      $region16: #{tpu_custom_call.1} parent=5 // pred_fallthru
        _
      %p173 = scmp.le.s32.totalorder 1, %s17
      %p174 = scmp.lt.s32.totalorder %s17, 3
      %p175 = pnand %p173, %p174
      %p176 = pneg %p175
      // Predicated region
      $region25: #{tpu_custom_call.1} parent=5 // pred_check
        _
      $region26: #{tpu_custom_call.1} parent=5 // pred_check_branch
        %178 = sbr.rel (%p175) target = $region28
      $region27: #{tpu_custom_call.1} parent=5 // pred_region
        %s179 = ssub.s32 %s17, 1
        %s180 = sand.u32 %s44, 1
        %s181 = scalar_lea.sflag [#allocation5], %s180
        %s182 = sand.u32 %s44, 1
        %s183 = smul.addr %s182, 8
        %s184 = scalar_lea.vmem [#allocation4], %s183
        // Predicated region
        $region29: #{tpu_custom_call.1} parent=27 // pred_check
          %p185 = pneg %p57
        $region30: #{tpu_custom_call.1} parent=27 // pred_check_branch
          %187 = sbr.rel (%p185) target = $region32
        $region31: #{tpu_custom_call.1} parent=27 // pred_region
          %189 = dma.done %s181, 128
        $region32: #{tpu_custom_call.1} parent=27 // pred_fallthru
          _
        %s190 = sand.u32 %s72, 1
        %s191 = scalar_lea.sflag [#allocation8], %s190
        %s192 = sand.u32 %s72, 1
        %s193 = smul.addr %s192, 2
        %s194 = scalar_lea.vmem [#allocation7], %s193
        // Predicated region
        $region33: #{tpu_custom_call.1} parent=27 // pred_check
          %p195 = pneg %p85
        $region34: #{tpu_custom_call.1} parent=27 // pred_check_branch
          %197 = sbr.rel (%p195) target = $region36
        $region35: #{tpu_custom_call.1} parent=27 // pred_region
          %199 = dma.done %s191, 32
        $region36: #{tpu_custom_call.1} parent=27 // pred_fallthru
          _
        %s200 = sand.u32 %s44, 1
        %s201 = scalar_lea.sflag [#allocation5], %s200
        %s202 = sand.u32 %s44, 1
        %s203 = smul.addr %s202, 8
        %s204 = scalar_lea.vmem [#allocation4], %s203
        %p205 = pneg %p57
        %p206 = pneg %p54
        %s207 = sand.u32 %s72, 1
        %s208 = scalar_lea.sflag [#allocation8], %s207
        %s209 = sand.u32 %s72, 1
        %s210 = smul.addr %s209, 2
        %s211 = scalar_lea.vmem [#allocation7], %s210
        %p212 = pneg %p85
        %p213 = pneg %p82
        %p214 = pneg %p111
        %p215 = pneg %p108
        %s216 = sand.u32 %s98, 1
        %s217 = scalar_lea.sflag [#allocation6], %s216
        %s218 = sand.u32 %s98, 1
        %s219 = smul.addr %s218, 8
        %s220 = scalar_lea.vmem [#allocation9], %s219
        %s221 = smul.u32 2, %s27
        %s222 = smul.u32 2, %s27
        %p223 = scmp.eq.s32.totalorder %s27, 0
        // Predicated region
        $region37: #{tpu_custom_call.1} parent=27 // pred_check
          %p224 = pneg %p223
        $region38: #{tpu_custom_call.1} parent=27 // pred_check_branch
          %226 = sbr.rel (%p224) target = $region40
        $region39: #{tpu_custom_call.1} parent=27 // pred_region
          %v227 = vlaneseq
          %vm228 = vcmp.ge.s32.totalorder %v227, 0
          %vm229 = vcmp.lt.s32.totalorder %v227, 256
          %vm230 = vmand %vm228, %vm229
          %231 = vst.msk [vmem:[#allocation2] sm:$0x3] %vm230, 0.0
          %232 = vst.msk [vmem:[#allocation3] sm:$0x3] %vm230, 0.0
        $region40: #{tpu_custom_call.1} parent=27 // pred_fallthru
          _
        %v233 = vld [vmem:[%s184] sm:$0xff]
        %v234 = vld [vmem:[%s194] sm:$0x3]
        %236 = vst [vmem:[#allocation1] ss:$2 sm:$0xff] %v233
        %v237 = vld.sshfl [vmem:[#allocation1] sm:$0xff pattern:$0x75316420]
        %v238 = vld.sshfl [vmem:[#allocation1 + $0x8] sm:$0xff pattern:$0x75316420]
        %vm241 = vcmask 1043456
        %v242 = vsel %vm241, %v237, -inf
        %v243 = vrot.slane %v242, 4
        %v244 = vmax.f32 %v242, %v243
        %v245 = vrot.slane %v244, 2
        %v246 = vmax.f32 %v244, %v245
        %v247 = vrot.slane %v246, 1
        %v248 = vmax.f32 %v246, %v247
        %v249 = vsel %vm241, %v238, -inf
        %v250 = vrot.slane %v249, 4
        %v251 = vmax.f32 %v249, %v250
        %v252 = vrot.slane %v251, 2
        %v253 = vmax.f32 %v251, %v252
        %v254 = vrot.slane %v253, 1
        %v255 = vmax.f32 %v253, %v254
        %v258 = vrot.slane %v255, 4
        %v259 = vsel %vm241, %v248, %v258
        %v261 = vsub.f32 %v233, %v259
        %v262 = vmul.f32 %v261, 1.442695
        %v263 = vpow.pop %v262
        %265 = vst [vmem:[#allocation1] ss:$2 sm:$0xff] %v263
        %v266 = vld.sshfl [vmem:[#allocation1] sm:$0xff pattern:$0x75316420]
        %v267 = vld.sshfl [vmem:[#allocation1 + $0x8] sm:$0xff pattern:$0x75316420]
        %v270 = vsel %vm241, %v266, 0.0
        %v271 = vrot.slane %v270, 4
        %v272 = vadd.f32 %v270, %v271
        %v273 = vrot.slane %v272, 2
        %v274 = vadd.f32 %v272, %v273
        %v275 = vrot.slane %v274, 1
        %v276 = vadd.f32 %v274, %v275
        %v277 = vsel %vm241, %v267, 0.0
        %v278 = vrot.slane %v277, 4
        %v279 = vadd.f32 %v277, %v278
        %v280 = vrot.slane %v279, 2
        %v281 = vadd.f32 %v279, %v280
        %v282 = vrot.slane %v281, 1
        %v283 = vadd.f32 %v281, %v282
        %v284 = vlog2.pop %v276
        %v285 = vmul.f32 %v284, 0.6931472
        %v286 = vlog2.pop %v283
        %v287 = vmul.f32 %v286, 0.6931472
        %v288 = vlaneseq
        %v289 = vshrl.u32 %v288, 7
        %v290 = vperm.slane %v234, 0
        %v291 = vperm.slane %v234, 1
        %vm292 = vcmp.eq.s32.totalorder %v289, %v290
        %vm293 = vcmp.eq.s32.totalorder %v289, %v291
        %294 = vst [vmem:[#allocation1] ss:$2 sm:$0xff] %v233
        %v295 = vld.sshfl [vmem:[#allocation1] sm:$0xff pattern:$0x75316420]
        %v296 = vld.sshfl [vmem:[#allocation1 + $0x8] sm:$0xff pattern:$0x75316420]
        %v299 = vsel %vm292, %v295, 0.0
        %v300 = vsel %vm293, %v296, 0.0
        %v301 = vsel %vm241, %v299, 0.0
        %v302 = vrot.slane %v301, 4
        %v303 = vadd.f32 %v301, %v302
        %v304 = vrot.slane %v303, 2
        %v305 = vadd.f32 %v303, %v304
        %v306 = vrot.slane %v305, 1
        %v307 = vadd.f32 %v305, %v306
        %v308 = vsel %vm241, %v300, 0.0
        %v309 = vrot.slane %v308, 4
        %v310 = vadd.f32 %v308, %v309
        %v311 = vrot.slane %v310, 2
        %v312 = vadd.f32 %v310, %v311
        %v313 = vrot.slane %v312, 1
        %v314 = vadd.f32 %v312, %v313
        %v315 = vsub.f32 %v248, %v307
        %v316 = vsub.f32 %v255, %v314
        %v317 = vadd.f32 %v315, %v285
        %v318 = vadd.f32 %v316, %v287
        %v319 = vmin.f32 %v317, 13.815511
        %v320 = vmin.f32 %v318, 13.815511
        %v321 = vld [vmem:[#allocation2] sm:$0x3]
        %v324 = vrot.slane %v320, 7
        %vm325 = vcmask 1040384
        %v326 = vsel %vm325, %v319, %v324
        %v328 = vadd.f32 %v321, %v326
        %v329 = vlaneseq
        %vm330 = vcmp.ge.s32.totalorder %v329, 0
        %vm331 = vcmp.lt.s32.totalorder %v329, 256
        %vm332 = vmand %vm330, %vm331
        %333 = vst.msk [vmem:[#allocation2] sm:$0x3] %vm332, %v328
        %v334 = vld [vmem:[#allocation3] sm:$0x3]
        %v335 = vmul.f32 %v319, %v319
        %v336 = vmul.f32 %v320, %v320
        %v339 = vrot.slane %v336, 7
        %v340 = vsel %vm325, %v335, %v339
        %v342 = vadd.f32 %v334, %v340
        %343 = vst.msk [vmem:[#allocation3] sm:$0x3] %vm332, %v342
        // Predicated region
        $region41: #{tpu_custom_call.1} parent=27 // pred_check
          %p344 = pneg %p223
        $region42: #{tpu_custom_call.1} parent=27 // pred_check_branch
          %346 = sbr.rel (%p344) target = $region44
        $region43: #{tpu_custom_call.1} parent=27 // pred_region
          %v347 = vld [vmem:[#allocation2] sm:$0x3]
          %v349 = vperm.slane %v347, 0
          %v350 = vperm.slane %v347, 1
          %v353 = vsel %vm325, %v349, 0.0
          %v354 = vsel %vm325, %v350, 0.0
          %v355 = vadd.f32 %v353, %v354
          %356 = vadd.xlane.f32.xlu0 %v355
          %v357 = vpop.xlane.xlu0 %356
          %v358 = vrot.slane %v357, 4
          %v359 = vadd.f32 %v357, %v358
          %v360 = vrot.slane %v359, 2
          %v361 = vadd.f32 %v359, %v360
          %v362 = vrot.slane %v361, 1
          %v363 = vadd.f32 %v361, %v362
          %s364 = vtos %v363
          %v365 = vld [vmem:[#allocation3] sm:$0x3]
          %v367 = vperm.slane %v365, 0
          %v368 = vperm.slane %v365, 1
          %v371 = vsel %vm325, %v367, 0.0
          %v372 = vsel %vm325, %v368, 0.0
          %v373 = vadd.f32 %v371, %v372
          %374 = vadd.xlane.f32.xlu0 %v373
          %v375 = vpop.xlane.xlu0 %374
          %v376 = vrot.slane %v375, 4
          %v377 = vadd.f32 %v375, %v376
          %v378 = vrot.slane %v377, 2
          %v379 = vadd.f32 %v377, %v378
          %v380 = vrot.slane %v379, 1
          %v381 = vadd.f32 %v379, %v380
          %s382 = vtos %v381
          %s383 = smul.f32 %s364, 0.00390625
          %s384 = smul.f32 %s382, 0.00390625
          %s385 = smul.f32 %s383, 0.5
          %s386 = smul.f32 %s385, %s383
          %s387 = ssub.f32 %s384, %s386
          %s388 = smax.f32 %s387, 0.0
          %v389 = vstv %s388
          %v390 = vrsqrt.pop %v389
          %v391 = vmul.f32 %v390, %v389
          %v392 = vmul.f32 %v391, %v390
          %v393 = vmul.f32 0.5, %v392
          %v394 = vsub.f32 1.5, %v393
          %v395 = vmul.f32 %v390, %v394
          %v396 = vmul.f32 %v389, %v395
          %vm397 = vcmp.eq.f32.partialorder %v389, inf
          %v398 = vsel %vm397, %v389, %v396
          %vm399 = vcmp.eq.f32.partialorder %v389, 0.0
          %v400 = vand.u32 %v389, 2147483648
          %v401 = vsel %vm399, %v400, %v398
          %s402 = vtos %v401
          %v403 = vstv %s402
          %404 = vst [vmem:[%s220] sm:$0xff] %v403
        $region44: #{tpu_custom_call.1} parent=27 // pred_fallthru
          _
        %s405 = sand.u32 %s98, 1
        %s406 = scalar_lea.sflag [#allocation6], %s405
        %s407 = sand.u32 %s98, 1
        %s408 = smul.addr %s407, 8
        %s409 = scalar_lea.vmem [#allocation9], %s408
        // Predicated region
        $region45: #{tpu_custom_call.1} parent=27 // pred_check
          %p410 = pneg %p108
        $region46: #{tpu_custom_call.1} parent=27 // pred_check_branch
          %412 = sbr.rel (%p410) target = $region48
        $region47: #{tpu_custom_call.1} parent=27 // pred_region
          %414 = vsyncadd %s406, 0
          %s415 = smul.addr %s26, 8
          %s416 = scalar_lea.hbm %s2, %s415
          %s418 = sshll.u32 %s409, 4
          %s419 = int_to_ptr.vmem [resolvable:$true] %s418
          %s420 = sshll.u32 %s416, 4
          %s421 = int_to_ptr.hbm [resolvable:$true] %s420
          %423 = dma.vmem_to_hbm [thread:$0]  %s419, 128, %s421, %s406
        $region48: #{tpu_custom_call.1} parent=27 // pred_fallthru
          _
      $region28: #{tpu_custom_call.1} parent=5 // pred_fallthru
        _
      %p424 = scmp.le.s32.totalorder 2, %s17
      // Predicated region
      $region49: #{tpu_custom_call.1} parent=5 // pred_check
        %p425 = pneg %p424
      $region50: #{tpu_custom_call.1} parent=5 // pred_check_branch
        %427 = sbr.rel (%p425) target = $region52
      $region51: #{tpu_custom_call.1} parent=5 // pred_region
        %s428 = ssub.s32 %s17, 2
        // Predicated region
        $region53: #{tpu_custom_call.1} parent=51 // pred_check
          %p429 = pneg %p114
        $region54: #{tpu_custom_call.1} parent=51 // pred_check_branch
          %431 = sbr.rel (%p429) target = $region56
        $region55: #{tpu_custom_call.1} parent=51 // pred_region
          %s432 = sand.u32 %s99, 1
          %s433 = scalar_lea.sflag [#allocation6], %s432
          %s434 = sand.u32 %s99, 1
          %s435 = smul.addr %s434, 8
          %s436 = scalar_lea.vmem [#allocation9], %s435
          %438 = dma.done %s433, 128
        $region56: #{tpu_custom_call.1} parent=51 // pred_fallthru
          _
      $region52: #{tpu_custom_call.1} parent=5 // pred_fallthru
        _
    $region6: #{tpu_custom_call.1} parent=1 // loop_footer
      %s21 = sadd.s32 1, %s17
    $region7: #{tpu_custom_call.1} parent=1 // loop_footer_branch
      %16 = sbr.rel target = $region3
    $region8: #{tpu_custom_call.1} parent=1 // loop_exit
      _
    %439 = vsyncpa [#allocation5], 1
    %s440 = scalar_lea.sflag [#allocation5], 1
    %441 = vsyncpa %s440, 1
    %442 = vsyncpa [#allocation8], 1
    %s443 = scalar_lea.sflag [#allocation8], 1
    %444 = vsyncpa %s443, 1
    %445 = vsyncpa [#allocation6], 1
    %s446 = scalar_lea.sflag [#allocation6], 1
    %447 = vsyncpa %s446, 1

</llo_original>
